<compile_context>
chip_gen: v5e
topology: v5e:2x2
jax: 0.10.0
libtpu: 0.0.40
codegen_flags: <defaults>
</compile_context>

<pallas_src>
import numpy as np
import jax
import jax.numpy as jnp
from jax import lax
from jax.experimental import pallas as pl
from jax.experimental.pallas import tpu as pltpu

_MEAN = (0.485, 0.456, 0.406)   # transforms.Normalize mean (RGB order)
_STD = (0.229, 0.224, 0.225)    # transforms.Normalize std  (RGB order)


def _device_vmem_bytes(default_bytes=64 * 1024 * 1024):
    """Best-effort query of per-core VMEM capacity (conservative fallback)."""
    try:
        info = pltpu.get_tpu_info()
        for name in ("vmem_capacity_bytes", "vmem_bytes"):
            val = getattr(info, name, None)
            if val:
                return int(val)
    except Exception:
        pass
    return default_bytes


# -----------------------------------------------------------------------------
# Kernel 1: one-time preprocessing (lane-dense (3, H*W) blocks)
#   x01 = x_rgb / 255                          (returned as x_crop)
#   v   = sum_c (x_rgb_c - 255*mean_c) * w_c   (folded per-pixel score vector),
#         emitted as a hi+lo bf16 pair (2, HW) so the hot loop runs fully bf16.
# -----------------------------------------------------------------------------
def _prepare_kernel(x_ref, w_ref, x01_ref, v2_ref):
    x = x_ref[...]                      # (3, HW) RGB image, values in [0, 255]
    w = w_ref[...]                      # (3, HW) scorer row, RGB-aligned
    x01_ref[...] = x * (1.0 / 255.0)
    # Normalize∘UnNormalize cancels: 255*std_c*norm_c = x_rgb_c - 255*mean_c
    acc = (x[0:1, :] - 255.0 * _MEAN[0]) * w[0:1, :]
    acc = acc + (x[1:2, :] - 255.0 * _MEAN[1]) * w[1:2, :]
    acc = acc + (x[2:3, :] - 255.0 * _MEAN[2]) * w[2:3, :]
    v_hi = acc.astype(jnp.bfloat16)
    v_lo = (acc - v_hi.astype(jnp.float32)).astype(jnp.bfloat16)
    v2_ref[...] = jnp.concatenate([v_hi, v_lo], axis=0)


def prepare(x_rgb2d, w_rgb2d):
    C, HW = x_rgb2d.shape
    full_spec = pl.BlockSpec((C, HW), lambda i: (0, 0))
    v2_spec = pl.BlockSpec((2, HW), lambda i: (0, 0))
    return pl.pallas_call(
        _prepare_kernel,
        grid=(1,),
        in_specs=[full_spec, full_spec],
        out_specs=(full_spec, v2_spec),
        out_shape=(jax.ShapeDtypeStruct((C, HW), jnp.float32),
                   jax.ShapeDtypeStruct((2, HW), jnp.bfloat16)),
    )(x_rgb2d, w_rgb2d)


# -----------------------------------------------------------------------------
# Kernel 2: the RISE accumulation loop (hot path), bf16 mask stream on the MXU.
#   per mask block:  scores = masks @ v + const ;  sal += scores . masks
#   grid = (num_partials [parallel], steps [arbitrary])
#   output: per-partial saliency (num_partials, 1, H*W); scaled by 1/(N*p1).
# -----------------------------------------------------------------------------
def saliency_map(masks2d, v2, const, *, N, p1, batch_size=256, num_partials=2):
    n, HW = masks2d.shape
    assert n == N
    itemsize = masks2d.dtype.itemsize

    # --- VMEM-aware block sizing (v7x has only 64 MiB per TensorCore) -------
    vmem_cap = _device_vmem_bytes()
    budget = int(0.6 * vmem_cap)
    # resident v2 (bf16, x2 buffers) + output block (f32, x2) + margin
    fixed = 2 * (2 * HW * 2) + 2 * (HW * 4) + (2 << 20)
    bs = max(8, int(batch_size))
    while bs > 8 and 2 * bs * HW * itemsize + fixed > budget:
        bs //= 2

    # --- zero-pad the mask axis so it tiles exactly (zero masks give exactly
    #     zero contribution: score*0 = 0); scale still uses the true N. -------
    chunk = num_partials * bs
    n_pad = ((n + chunk - 1) // chunk) * chunk
    if n_pad != n:
        masks2d = jnp.pad(masks2d, ((0, n_pad - n), (0, 0)))
    inner = n_pad // chunk
    inv_scale = 1.0 / (float(N) * float(p1))

    def kernel(masks_ref, v2_ref, const_ref, sal_ref):
        i = pl.program_id(1)

        @pl.when(i == 0)
        def _init():
            sal_ref[...] = jnp.zeros_like(sal_ref)

        m = masks_ref[...]                                   # (bs, HW) bf16
        # scores: (2,HW) x (bs,HW)^T on the MXU.  The transposed-RHS
        # contraction over the lane dim is the native flash-attention q@k^T
        # pattern, so no transpose of the big mask block is materialized.
        parts = lax.dot_general(
            v2_ref[...], m, dimension_numbers=(((1,), (1,)), ((), ())),
            preferred_element_type=jnp.float32)              # (2, bs) f32
        scores = parts[0:1, :] + parts[1:2, :] + const_ref[0]
        # hi+lo bf16 split keeps ~f32 accuracy through the bf16 MXU path.
        s_hi = scores.astype(jnp.bfloat16)
        s_lo = (scores - s_hi.astype(jnp.float32)).astype(jnp.bfloat16)
        # saliency += sum_b score_b * mask_b  -> MXU (1,bs)@(bs,HW)
        sal_ref[...] += (
            jnp.dot(s_hi, m, preferred_element_type=jnp.float32)
            + jnp.dot(s_lo, m, preferred_element_type=jnp.float32))  # (1, HW)

        @pl.when(i == pl.num_programs(1) - 1)
        def _finalize():
            sal_ref[...] = sal_ref[...] * inv_scale          # /N /p1 per partial

    need = 2 * bs * HW * itemsize + fixed                    # dtype-aware
    vmem_limit = int(max(16 << 20, min(need, int(0.9 * vmem_cap))))

    return pl.pallas_call(
        kernel,
        grid=(num_partials, inner),
        in_specs=[
            pl.BlockSpec((bs, HW), lambda p, i: (p * inner + i, 0)),
            pl.BlockSpec((2, HW), lambda p, i: (0, 0)),
            pl.BlockSpec(memory_space=pltpu.MemorySpace.SMEM),   # const scalar
        ],
        out_specs=pl.BlockSpec((None, 1, HW), lambda p, i: (p, 0, 0)),
        out_shape=jax.ShapeDtypeStruct((num_partials, 1, HW), jnp.float32),
        compiler_params=pltpu.CompilerParams(
            dimension_semantics=("parallel", "arbitrary"),
            vmem_limit_bytes=vmem_limit),
    )(masks2d, v2, const)


# -----------------------------------------------------------------------------
# RISE.forward
# -----------------------------------------------------------------------------
def rise_forward(x, hp, masks, w_track, bbox, *, N, p1, batch_size=256,
                 num_partials=2):
    # TODO(synk): self.model.track_cam(x, hp) / self.model.model.track(...) are
    # an external SiamRPN tracker CNN with no Pallas equivalent here; replaced
    # by the deterministic linear scorer `w_track` whose output plays the role
    # of the flattened cls map.
    del hp
    _, C, H, W = x.shape
    HW = H * W
    x_bgr = x[0].reshape(C, HW)                       # (3, HW), BGR, [0, 255]

    # surrogate cls map + argmax index (wrapper glue, tiny)
    cls = jnp.einsum('chw,kchw->k', x[0], w_track)
    idx = jnp.argmax(cls)
    w_sel = jnp.take(w_track.reshape(w_track.shape[0], C, HW), idx, axis=0)

    # channel flip BGR->RGB is a pure permutation (glue)
    x_rgb = x_bgr[::-1]
    w_rgb = w_sel[::-1]                               # align scorer with RGB idx

    # Pallas: x_crop/255 and the folded per-pixel score vector v (hi+lo bf16)
    x01, v2 = prepare(x_rgb, w_rgb)

    # constant part of every per-mask score (mean term over the whole image)
    mean = jnp.asarray(_MEAN, jnp.float32)
    const = (255.0 * jnp.dot(mean, jnp.sum(w_rgb, axis=1))).reshape(1)
    const = const.astype(jnp.float32)

    # lane-dense bf16 masks: halves HBM traffic of the bandwidth-bound loop
    masks2d = masks.reshape(N, HW)
    if masks2d.dtype != jnp.bfloat16:
        masks2d = masks2d.astype(jnp.bfloat16)

    partials = saliency_map(masks2d, v2, const, N=N, p1=p1,
                            batch_size=batch_size, num_partials=num_partials)
    saliency = jnp.sum(partials, axis=0).reshape(1, 1, H, W)
    x_crop_rgb01 = x01.reshape(1, C, H, W)
    return saliency, x_crop_rgb01, bbox


# -----------------------------------------------------------------------------
# generate_masks (init-time glue, deterministic); stored bf16 so no f32 copy of
# the (N, H, W) mask tensor ever lands in HBM.
# -----------------------------------------------------------------------------
def generate_masks(key, N, s, p1, input_size, dtype=jnp.bfloat16):
    # approximates skimage.transform.resize(order=1, mode='reflect') with
    # jax.image.resize bilinear (init-time glue, not part of the hot path).
    H, W = input_size
    cell_h = int(np.ceil(H / s))
    cell_w = int(np.ceil(W / s))
    up_h, up_w = (s + 1) * cell_h, (s + 1) * cell_w
    k1, k2, k3 = jax.random.split(key, 3)
    grid = (jax.random.uniform(k1, (N, s, s)) < p1).astype(jnp.float32)
    up = jax.vmap(lambda g: jax.image.resize(g, (up_h, up_w),
                                             method='bilinear'))(grid)
    xs = np.asarray(jax.random.randint(k2, (N,), 0, cell_h))
    ys = np.asarray(jax.random.randint(k3, (N,), 0, cell_w))
    up_np = np.asarray(up)
    masks = np.empty((N, H, W), np.float32)
    for i in range(N):
        masks[i] = up_np[i, xs[i]:xs[i] + H, ys[i]:ys[i] + W]
    return jnp.asarray(masks, dtype=dtype)


# -----------------------------------------------------------------------------
# Pure-JAX reference of the same forward (un-folded chain, f32 math) for
# correctness; takes the masks as f32 values.
# -----------------------------------------------------------------------------
def _rise_reference(x, masks, w_track, N, p1):
    mean = jnp.array(_MEAN, jnp.float32).reshape(3, 1, 1)
    std = jnp.array(_STD, jnp.float32).reshape(3, 1, 1)
    cls = jnp.einsum('chw,kchw->k', x[0], w_track)
    idx = jnp.argmax(cls)
    x_rgb = x[0, ::-1] / 255.0
    norm = (x_rgb - mean) / std
    masked = masks[:, None] * norm[None]            # (N, 3, H, W)
    img = masked * std[None] + mean[None]
    img_bgr = img[:, ::-1] * 255.0
    scores = jnp.einsum('nchw,chw->n', img_bgr, w_track[idx],
                        precision=jax.lax.Precision.HIGHEST)
    sal = jnp.einsum('n,nhw->hw', scores, masks,
                     precision=jax.lax.Precision.HIGHEST) / N / p1
    return sal[None, None]


if __name__ == "__main__":
    H = W = 16                     # input_size (small stand-in for INSTANCE_SIZE)
    N, batch_size, num_partials = 900, 256, 2   # N deliberately not a multiple
    s, p1, K = 7, 0.1, 8

    key = jax.random.PRNGKey(0)
    kx, kw, km = jax.random.split(key, 3)
    # x plays the role of the tracker's x_crop: (1, 3, H, W), BGR, 0..255
    x = jax.random.uniform(kx, (1, 3, H, W), jnp.float32,
                           minval=0.0, maxval=255.0)
    # deterministic surrogate tracker weights (K flattened cls entries)
    w_track = jax.random.normal(kw, (K, 3, H, W), jnp.float32) * 0.01
    bbox = jnp.array([4.0, 4.0, 8.0, 8.0], jnp.float32)
    masks = generate_masks(km, N, s, p1, (H, W))   # bf16, streamed as-is
    hp = None

    saliency, x_crop_rgb, bbox_out = rise_forward(
        x, hp, masks, w_track, bbox, N=N, p1=p1,
        batch_size=batch_size, num_partials=num_partials)
    jax.block_until_ready(saliency)

    # Reference runs the full (un-folded) chain in f32 on the same bf16-valued
    # masks; the hi+lo bf16 split in the kernel keeps the gap at ~1e-5 rel.
    masks_f32 = masks.astype(jnp.float32)
    sal_ref = _rise_reference(x, masks_f32, w_track, N, p1)
    np.testing.assert_allclose(np.asarray(saliency), np.asarray(sal_ref),
                               rtol=1e-3, atol=1e-3)
    x_crop_ref = np.asarray(x[0, ::-1] / 255.0)[None]
    np.testing.assert_allclose(np.asarray(x_crop_rgb), x_crop_ref,
                               rtol=1e-6, atol=1e-6)
    print("KERNEL_OK")
</pallas_src>

<mosaic_0001>
module attributes {stable_mosaic.version = 11 : i64} {
  func.func @_prepare_kernel(%arg0: i32, %arg1: memref<3x256xf32, #tpu.memory_space<vmem>>, %arg2: memref<3x256xf32, #tpu.memory_space<vmem>>, %arg3: memref<3x256xf32, #tpu.memory_space<vmem>>, %arg4: memref<2x256xbf16, #tpu.memory_space<vmem>>) attributes {dimension_semantics = [#tpu.dimension_semantics<arbitrary>], iteration_bounds = array<i64: 1>, scalar_prefetch = 0 : i64, scratch_operands = 0 : i64, tpu.core_type = #tpu.core_type<tc>, window_params = [{pipeline_mode = #tpu.pipeline_mode<synchronous>, transform_indices = @transform_0, window_bounds = array<i64: 3, 256>}, {pipeline_mode = #tpu.pipeline_mode<synchronous>, transform_indices = @transform_1, window_bounds = array<i64: 3, 256>}, {pipeline_mode = #tpu.pipeline_mode<synchronous>, transform_indices = @transform_2, window_bounds = array<i64: 3, 256>}, {pipeline_mode = #tpu.pipeline_mode<synchronous>, transform_indices = @transform_3, window_bounds = array<i64: 2, 256>}]} {
    %c0 = arith.constant 0 : index
    %c0_0 = arith.constant 0 : index
    %0 = vector.load %arg1[%c0, %c0_0] : memref<3x256xf32, #tpu.memory_space<vmem>>, vector<3x256xf32>
    %c0_1 = arith.constant 0 : index
    %c0_2 = arith.constant 0 : index
    %1 = vector.load %arg2[%c0_1, %c0_2] : memref<3x256xf32, #tpu.memory_space<vmem>>, vector<3x256xf32>
    %cst = arith.constant 0.00392156886 : f32
    %2 = vector.broadcast %cst : f32 to vector<3x256xf32>
    %3 = arith.mulf %0, %2 : vector<3x256xf32>
    %c0_3 = arith.constant 0 : index
    %c0_4 = arith.constant 0 : index
    %4 = vector.load %arg3[%c0_3, %c0_4] : memref<3x256xf32, #tpu.memory_space<vmem>>, vector<3x256xf32>
    tpu.vector_store %arg3[%c0_3, %c0_4], %3 {strides = array<i32>} : memref<3x256xf32, #tpu.memory_space<vmem>>, vector<3x256xf32>,
    %5 = vector.extract_strided_slice %0 {offsets = [0, 0], sizes = [1, 256], strides = [1, 1]} : vector<3x256xf32> to vector<1x256xf32>
    %cst_5 = arith.constant 1.236750e+02 : f32
    %6 = vector.broadcast %cst_5 : f32 to vector<1x256xf32>
    %7 = arith.subf %5, %6 : vector<1x256xf32>
    %8 = vector.extract_strided_slice %1 {offsets = [0, 0], sizes = [1, 256], strides = [1, 1]} : vector<3x256xf32> to vector<1x256xf32>
    %9 = arith.mulf %7, %8 : vector<1x256xf32>
    %10 = vector.extract_strided_slice %0 {offsets = [1, 0], sizes = [1, 256], strides = [1, 1]} : vector<3x256xf32> to vector<1x256xf32>
    %cst_6 = arith.constant 1.162800e+02 : f32
    %11 = vector.broadcast %cst_6 : f32 to vector<1x256xf32>
    %12 = arith.subf %10, %11 : vector<1x256xf32>
    %13 = vector.extract_strided_slice %1 {offsets = [1, 0], sizes = [1, 256], strides = [1, 1]} : vector<3x256xf32> to vector<1x256xf32>
    %14 = arith.mulf %12, %13 : vector<1x256xf32>
    %15 = arith.addf %9, %14 : vector<1x256xf32>
    %16 = vector.extract_strided_slice %0 {offsets = [2, 0], sizes = [1, 256], strides = [1, 1]} : vector<3x256xf32> to vector<1x256xf32>
    %cst_7 = arith.constant 1.035300e+02 : f32
    %17 = vector.broadcast %cst_7 : f32 to vector<1x256xf32>
    %18 = arith.subf %16, %17 : vector<1x256xf32>
    %19 = vector.extract_strided_slice %1 {offsets = [2, 0], sizes = [1, 256], strides = [1, 1]} : vector<3x256xf32> to vector<1x256xf32>
    %20 = arith.mulf %18, %19 : vector<1x256xf32>
    %21 = arith.addf %15, %20 : vector<1x256xf32>
    %22 = arith.truncf %21 : vector<1x256xf32> to vector<1x256xbf16>
    %23 = arith.extf %22 : vector<1x256xbf16> to vector<1x256xf32>
    %24 = arith.subf %21, %23 : vector<1x256xf32>
    %25 = arith.truncf %24 : vector<1x256xf32> to vector<1x256xbf16>
    %26 = tpu.concatenate %22, %25 in 0 : vector<1x256xbf16>, vector<1x256xbf16> -> vector<2x256xbf16>
    %c0_8 = arith.constant 0 : index
    %c0_9 = arith.constant 0 : index
    %27 = vector.load %arg4[%c0_8, %c0_9] : memref<2x256xbf16, #tpu.memory_space<vmem>>, vector<2x256xbf16>
    tpu.vector_store %arg4[%c0_8, %c0_9], %26 {strides = array<i32>} : memref<2x256xbf16, #tpu.memory_space<vmem>>, vector<2x256xbf16>,
    return
  }
  func.func @transform_0(%arg0: i32) -> (i32, i32) {
    %c0_i32 = arith.constant 0 : i32
    %c0_i32_0 = arith.constant 0 : i32
    %c0_i32_1 = arith.constant 0 : i32
    return %c0_i32, %c0_i32_0 : i32, i32
  }
  func.func @transform_1(%arg0: i32) -> (i32, i32) {
    %c0_i32 = arith.constant 0 : i32
    %c0_i32_0 = arith.constant 0 : i32
    %c0_i32_1 = arith.constant 0 : i32
    return %c0_i32, %c0_i32_0 : i32, i32
  }
  func.func @transform_2(%arg0: i32) -> (i32, i32) {
    %c0_i32 = arith.constant 0 : i32
    %c0_i32_0 = arith.constant 0 : i32
    %c0_i32_1 = arith.constant 0 : i32
    return %c0_i32, %c0_i32_0 : i32, i32
  }
  func.func @transform_3(%arg0: i32) -> (i32, i32) {
    %c0_i32 = arith.constant 0 : i32
    %c0_i32_0 = arith.constant 0 : i32
    %c0_i32_1 = arith.constant 0 : i32
    return %c0_i32, %c0_i32_0 : i32, i32
  }
}

</mosaic_0001>

<llo_original>
// kernel: tpu_custom_call.1
$region0: #{tpu_custom_call.1}
  #allocation0 [shape = 'u32[]', space=smem, size = 0x4, offset = 0x4, fixed_abs, tag = 'smem constant byte address 0x4 - core index']
  #allocation1 [shape = 'u32[72,128]{1,0:T(1,128)}', space=vmem, size = 0x9000, scoped, tag = 'internal scratch']
  %s0 = inlined_call_operand.hbm [shape: f32[3,256], index: 0, kind: input, shape index: {}]
  %s1 = inlined_call_operand.hbm [shape: f32[3,256], index: 1, kind: input, shape index: {}]
  %s2 = inlined_call_operand.hbm [shape: f32[3,256], index: 2, kind: output, shape index: {0}]
  %s3 = inlined_call_operand.hbm [shape: bf16[2,256], index: 3, kind: output, shape index: {1}]
  %4 = xla_tuple %s2, %s3
  %s5 = sld [smem:[#allocation0]]
  $region34: #{tpu_custom_call.1} parent=0
    _
  %s7 = ssub.s32 1, %s5
  %s8 = scalar_select 0, %s7, %s5
  $region1: #{tpu_custom_call.1} parent=0
    #allocation2 [shape = 'u8[4096]{0}', space=vmem, size = 0x1000, scoped, tag = 'input window, operand 0, single buffered']
    #allocation3 [shape = 's32[1]{0}', space=sflag, size = 0x4, scoped, tag = 'scoped memory for tpu_custom_call.1']
    #allocation4 [shape = 's32[1]{0}', space=sflag, size = 0x4, scoped, tag = 'scoped memory for tpu_custom_call.1']
    #allocation5 [shape = 'u8[4096]{0}', space=vmem, size = 0x1000, scoped, tag = 'input window, operand 1, single buffered']
    #allocation6 [shape = 's32[1]{0}', space=sflag, size = 0x4, scoped, tag = 'scoped memory for tpu_custom_call.1']
    #allocation7 [shape = 'u8[4096]{0}', space=vmem, size = 0x1000, scoped, tag = 'output window, operand 0, single buffered']
    #allocation8 [shape = 'u8[1024]{0}', space=vmem, size = 0x400, scoped, tag = 'output window, operand 1, single buffered']
    #allocation9 [shape = 's32[1]{0}', space=sflag, size = 0x4, scoped, tag = 'scoped memory for tpu_custom_call.1']
    %9 = vsyncpa [#allocation3], 0
    %10 = vsyncpa [#allocation6], 0
    %11 = vsyncpa [#allocation4], 0
    %12 = vsyncpa [#allocation9], 0
    // Predicated region
    $region2: #{tpu_custom_call.1} parent=1 // pred_check
      _
    $region3: #{tpu_custom_call.1} parent=1 // pred_check_branch
      %14 = sbr.rel (0) target = $region5
    $region4: #{tpu_custom_call.1} parent=1 // pred_region
      %16 = vsyncadd [#allocation3], 0
      %s18 = sshll.u32 %s0, 4
      %s19 = int_to_ptr.hbm [resolvable:$true] %s18
      %s20 = sshll.u32 [#allocation2], 4
      %s21 = int_to_ptr.vmem [resolvable:$true] %s20
      %23 = dma.hbm_to_vmem [thread:$0]  %s19, 128, %s21, [#allocation3]
    $region5: #{tpu_custom_call.1} parent=1 // pred_fallthru
      _
    // Predicated region
    $region6: #{tpu_custom_call.1} parent=1 // pred_check
      _
    $region7: #{tpu_custom_call.1} parent=1 // pred_check_branch
      %25 = sbr.rel (0) target = $region9
    $region8: #{tpu_custom_call.1} parent=1 // pred_region
      %27 = vsyncadd [#allocation6], 0
      %s29 = sshll.u32 %s1, 4
      %s30 = int_to_ptr.hbm [resolvable:$true] %s29
      %s31 = sshll.u32 [#allocation5], 4
      %s32 = int_to_ptr.vmem [resolvable:$true] %s31
      %34 = dma.hbm_to_vmem [thread:$0]  %s30, 128, %s32, [#allocation6]
    $region9: #{tpu_custom_call.1} parent=1 // pred_fallthru
      _
    // Predicated region
    $region10: #{tpu_custom_call.1} parent=1 // pred_check
      _
    $region11: #{tpu_custom_call.1} parent=1 // pred_check_branch
      %36 = sbr.rel (0) target = $region13
    $region12: #{tpu_custom_call.1} parent=1 // pred_region
      %38 = dma.done [#allocation3], 128
    $region13: #{tpu_custom_call.1} parent=1 // pred_fallthru
      _
    // Predicated region
    $region14: #{tpu_custom_call.1} parent=1 // pred_check
      _
    $region15: #{tpu_custom_call.1} parent=1 // pred_check_branch
      %40 = sbr.rel (0) target = $region17
    $region16: #{tpu_custom_call.1} parent=1 // pred_region
      %42 = dma.done [#allocation6], 128
    $region17: #{tpu_custom_call.1} parent=1 // pred_fallthru
      _
    %v43 = vld [vmem:[#allocation2] sm:$0x77]
    %v44 = vld [vmem:[#allocation5] sm:$0x77]
    %v45 = vmul.f32 %v43, 0.003921569
    %46 = vst [vmem:[#allocation7] sm:$0x77] %v45
    %v47 = vsub.f32 %v43, 123.675
    %v48 = vmul.f32 %v47, %v44
    %v49 = vsub.f32 %v43, 116.28
    %v50 = vmul.f32 %v49, %v44
    %v52 = vrot.slane %v50, 5
    %v53 = vrot.slane %v52, 4
    %v55 = vadd.f32 %v48, %v53
    %v56 = vsub.f32 %v43, 103.53
    %v57 = vmul.f32 %v56, %v44
    %v59 = vrot.slane %v57, 6
    %v60 = vrot.slane %v59, 4
    %v62 = vadd.f32 %v55, %v60
    %v64 = vperm.slane %v62, 0
    %v65 = vperm.slane %v62, 4
    %v68 = vpack.c.bf16 %v65, %v64
    %v69 = vunpack.c.l.bf16 %v68
    %v70 = vunpack.c.h.bf16 %v68
    %v73 = vrot.slane %v70, 4
    %vm74 = vcmask 1043456
    %v75 = vsel %vm74, %v69, %v73
    %v77 = vsub.f32 %v62, %v75
    %v79 = vperm.slane %v77, 0
    %v80 = vperm.slane %v77, 4
    %v83 = vpack.c.bf16 %v80, %v79
    %v85 = vunpack.c.l.b16 %v68
    %v86 = vunpack.c.h.b16 %v68
    %v87 = vpack.c.b16 %v85, %v85
    %v88 = vpack.c.b16 %v86, %v86
    %v92 = vunpack.c.l.b16 %v83
    %v93 = vunpack.c.h.b16 %v83
    %v94 = vpack.c.b16 %v92, %v92
    %v95 = vpack.c.b16 %v93, %v93
    %v97 = vshll.u32 %v94, 16
    %v100 = vshll.u32 %v95, 16
    %vm104 = vcmask 1040384
    %vm105 = vsmask.f32 256
    %vm106 = vmand %vm104, %vm105
    %v107 = vsel %vm106, %v87, %v97
    %v108 = vsel %vm106, %v88, %v100
    %v110 = vrot.slane %v108, 7
    %vm111 = vcmask 1040384
    %v114 = vsel %vm111, %v107, %v110
    %116 = vst [vmem:[#allocation8] sm:$0x3] %v114
    // Predicated region
    $region18: #{tpu_custom_call.1} parent=1 // pred_check
      _
    $region19: #{tpu_custom_call.1} parent=1 // pred_check_branch
      %118 = sbr.rel (0) target = $region21
    $region20: #{tpu_custom_call.1} parent=1 // pred_region
      %120 = vsyncadd [#allocation4], 0
      %s122 = sshll.u32 [#allocation7], 4
      %s123 = int_to_ptr.vmem [resolvable:$true] %s122
      %s124 = sshll.u32 %s2, 4
      %s125 = int_to_ptr.hbm [resolvable:$true] %s124
      %127 = dma.vmem_to_hbm [thread:$0]  %s123, 128, %s125, [#allocation4]
    $region21: #{tpu_custom_call.1} parent=1 // pred_fallthru
      _
    // Predicated region
    $region22: #{tpu_custom_call.1} parent=1 // pred_check
      _
    $region23: #{tpu_custom_call.1} parent=1 // pred_check_branch
      %129 = sbr.rel (0) target = $region25
    $region24: #{tpu_custom_call.1} parent=1 // pred_region
      %131 = vsyncadd [#allocation9], 0
      %s133 = sshll.u32 [#allocation8], 4
      %s134 = int_to_ptr.vmem [resolvable:$true] %s133
      %s135 = sshll.u32 %s3, 4
      %s136 = int_to_ptr.hbm [resolvable:$true] %s135
      %138 = dma.vmem_to_hbm [thread:$0]  %s134, 32, %s136, [#allocation9]
    $region25: #{tpu_custom_call.1} parent=1 // pred_fallthru
      _
    // Predicated region
    $region26: #{tpu_custom_call.1} parent=1 // pred_check
      _
    $region27: #{tpu_custom_call.1} parent=1 // pred_check_branch
      %140 = sbr.rel (0) target = $region29
    $region28: #{tpu_custom_call.1} parent=1 // pred_region
      %142 = dma.done [#allocation4], 128
    $region29: #{tpu_custom_call.1} parent=1 // pred_fallthru
      _
    // Predicated region
    $region30: #{tpu_custom_call.1} parent=1 // pred_check
      _
    $region31: #{tpu_custom_call.1} parent=1 // pred_check_branch
      %144 = sbr.rel (0) target = $region33
    $region32: #{tpu_custom_call.1} parent=1 // pred_region
      %146 = dma.done [#allocation9], 32
    $region33: #{tpu_custom_call.1} parent=1 // pred_fallthru
      _
    %147 = vsyncpa [#allocation3], 1
    %148 = vsyncpa [#allocation6], 1
    %149 = vsyncpa [#allocation4], 1
    %150 = vsyncpa [#allocation9], 1

</llo_original>
